<compile_context>
chip_gen: v7x
topology: tpu7x:2x2x1
jax: 0.10.0
libtpu: 0.0.40
codegen_flags: <defaults>
</compile_context>

<pallas_src>
import math

import jax
import jax.numpy as jnp
from jax.experimental import pallas as pl
from jax.experimental.pallas import tpu as pltpu


def _round_up(x, m):
    return ((x + m - 1) // m) * m


def _dense_kernel(x_ref, w_ref, o_ref):
    # x_ref: (TM, d) row tile, w_ref: (d, TN) resident weight column tile,
    # o_ref: (TM, TN) output tile.  f32 accumulation on the MXU.
    o_ref[...] = jnp.dot(
        x_ref[...], w_ref[...], preferred_element_type=jnp.float32
    ).astype(o_ref.dtype)


def _vmem_budget_bytes():
    """Generation-aware VMEM sizing (tile budget, compiler limit)."""
    try:
        cap = int(pltpu.get_tpu_info().vmem_capacity_bytes)
    except Exception:  # non-TPU backends / older runtimes
        cap = 64 * 1024 * 1024  # conservative: v7x per-TC capacity
    budget = int(cap * 0.55)       # what we size tiles against
    vmem_limit = int(cap * 0.72)   # explicit limit, headroom for compiler scratch
    return budget, vmem_limit


def multi_head_dense(x, weight, *, compute_dtype=None):
    """out[b] = x[b] @ weight   (x: (b, wh, d), weight: (d, d))."""
    b, wh, d = x.shape
    assert weight.shape == (d, d)

    if compute_dtype is not None:
        # Optional reduced-precision compute path (numerics change; gated).
        x = x.astype(compute_dtype)
        weight = weight.astype(compute_dtype)

    dtype = x.dtype
    itemsize = jnp.dtype(dtype).itemsize
    sublane = max(8, 32 // itemsize)  # 8 (f32) / 16 (bf16) / 32 (int8) packing
    M = b * wh

    budget, vmem_limit = _vmem_budget_bytes()

    # ---------- Column (N) tiling of the resident weight --------------------
    # Keep the single-buffered weight tile within ~1/3 of the budget so most
    # VMEM goes to the large, double-buffered row tiles.
    d_lane = _round_up(d, 128)
    d_sub = _round_up(d, sublane)
    w_budget = budget // 3
    if d_sub * d_lane * itemsize <= w_budget:
        TN, num_n = d, 1                       # whole weight stays resident
    else:
        cols = max(128, ((w_budget // (d_sub * itemsize)) // 128) * 128)
        num_n = pl.cdiv(d, cols)
        TN = _round_up(pl.cdiv(d, num_n), 128)  # balanced, lane-aligned tiles
        num_n = pl.cdiv(d, TN)
    tn_lane = _round_up(TN, 128)
    w_tile_bytes = d_sub * tn_lane * itemsize   # Buffered(1): one copy only

    # ---------- Row (M) tiling ----------------------------------------------
    per_row = 2 * (d_lane + tn_lane) * itemsize  # double-buffered x + out tiles
    tm_cap = max((budget - w_tile_bytes) // per_row, sublane)
    tm_cap = min(1024, tm_cap)
    if tm_cap >= 128:
        tm_cap = (tm_cap // 128) * 128

    if M <= tm_cap:
        TM = _round_up(M, sublane)               # one tile covers all rows
    else:
        num_m = pl.cdiv(M, tm_cap)
        TM = _round_up(pl.cdiv(M, num_m), 128)   # balanced, no fat remainder tile
    # v7x has 2 TensorCores: give the "parallel" M axis at least 2 tiles.
    if M > 256 and pl.cdiv(M, TM) == 1:
        TM = max(sublane, _round_up(pl.cdiv(M, 2), sublane))
    num_m = pl.cdiv(M, TM)

    x2 = x.reshape(M, d)  # contiguous merge of leading dims: no data movement

    out = pl.pallas_call(
        _dense_kernel,
        out_shape=jax.ShapeDtypeStruct((M, d), dtype),
        grid_spec=pltpu.PrefetchScalarGridSpec(
            num_scalar_prefetch=0,
            grid=(num_m, num_n),
            in_specs=[
                # Row tile of the flattened activations; block index constant
                # over n so it stays resident while we sweep weight columns.
                pl.BlockSpec((TM, d), lambda i, n: (i, 0)),
                # Shared weight column tile: constant over i -> resident, and
                # single-buffered (second pipeline buffer would be wasted VMEM).
                pl.BlockSpec((d, TN), lambda i, n: (0, n),
                             pipeline_mode=pl.Buffered(1)),
            ],
            out_specs=pl.BlockSpec((TM, TN), lambda i, n: (i, n)),
        ),
        compiler_params=pltpu.CompilerParams(
            dimension_semantics=("parallel", "parallel"),
            vmem_limit_bytes=vmem_limit,
        ),
        cost_estimate=pl.CostEstimate(
            flops=2 * M * d * d,
            transcendentals=0,
            bytes_accessed=(2 * M * d + d * d) * itemsize,
        ),
    )(x2, weight)

    return out.reshape(b, wh, d)


def init_weight(key, d, dtype=jnp.float32):
    # nn.init.kaiming_uniform_(weight, a=sqrt(5)) on a (d, d) tensor:
    #   gain  = sqrt(2 / (1 + a^2)) = sqrt(1/3)
    #   bound = gain * sqrt(3 / fan_in) = sqrt(1 / d)
    bound = math.sqrt(1.0 / d)
    return jax.random.uniform(key, (d, d), dtype=dtype, minval=-bound, maxval=bound)


if __name__ == "__main__":
    key = jax.random.PRNGKey(0)
    kx, kw = jax.random.split(key)

    b, wh, d = 2, 16, 32  # small shapes consistent with forward(x: (b, wh, d))
    x = jax.random.normal(kx, (b, wh, d), dtype=jnp.float32)
    w = init_weight(kw, d)

    out = multi_head_dense(x, w)
    out = jax.block_until_ready(out)

    # Reference check against plain JAX (same semantics as torch.bmm with the
    # shared weight broadcast over the batch).
    ref = jnp.einsum("bwd,de->bwe", x, w)
    assert out.shape == (b, wh, d)
    assert jnp.allclose(out, ref, atol=1e-5, rtol=1e-5)

    print("KERNEL_OK")
</pallas_src>

<mosaic_0001>
module attributes {stable_mosaic.version = 11 : i64} {
  func.func @_dense_kernel(%arg0: i32, %arg1: i32, %arg2: memref<32x32xf32, #tpu.memory_space<vmem>>, %arg3: memref<32x32xf32, #tpu.memory_space<vmem>>, %arg4: memref<32x32xf32, #tpu.memory_space<vmem>>) attributes {dimension_semantics = [#tpu.dimension_semantics<parallel>, #tpu.dimension_semantics<parallel>], iteration_bounds = array<i64: 1, 1>, scalar_prefetch = 0 : i64, scratch_operands = 0 : i64, tpu.core_type = #tpu.core_type<tc>, window_params = [{transform_indices = @transform_0, window_bounds = array<i64: 32, 32>}, {pipeline_mode = #tpu.pipeline_mode<synchronous>, transform_indices = @transform_1, window_bounds = array<i64: 32, 32>}, {transform_indices = @transform_2, window_bounds = array<i64: 32, 32>}]} {
    %c0 = arith.constant 0 : index
    %c0_0 = arith.constant 0 : index
    %0 = vector.load %arg2[%c0, %c0_0] : memref<32x32xf32, #tpu.memory_space<vmem>>, vector<32x32xf32>
    %c0_1 = arith.constant 0 : index
    %c0_2 = arith.constant 0 : index
    %1 = vector.load %arg3[%c0_1, %c0_2] : memref<32x32xf32, #tpu.memory_space<vmem>>, vector<32x32xf32>
    %cst = arith.constant dense<0.000000e+00> : vector<32x32xf32>
    %2 = tpu.matmul %0, %1, %cst {dimension_numbers = #tpu.dot_dimension_numbers<[1], [0], [0], [1], [0, 0, 1, 1], [], []>} : vector<32x32xf32>, vector<32x32xf32>, vector<32x32xf32> -> vector<32x32xf32>
    %c0_3 = arith.constant 0 : index
    %c0_4 = arith.constant 0 : index
    %3 = vector.load %arg4[%c0_3, %c0_4] : memref<32x32xf32, #tpu.memory_space<vmem>>, vector<32x32xf32>
    tpu.vector_store %arg4[%c0_3, %c0_4], %2 {strides = array<i32>} : memref<32x32xf32, #tpu.memory_space<vmem>>, vector<32x32xf32>,
    return
  }
  func.func @transform_0(%arg0: i32, %arg1: i32) -> (i32, i32) {
    %c0_i32 = arith.constant 0 : i32
    %c0_i32_0 = arith.constant 0 : i32
    return %arg0, %c0_i32 : i32, i32
  }
  func.func @transform_1(%arg0: i32, %arg1: i32) -> (i32, i32) {
    %c0_i32 = arith.constant 0 : i32
    %c0_i32_0 = arith.constant 0 : i32
    return %c0_i32, %arg1 : i32, i32
  }
  func.func @transform_2(%arg0: i32, %arg1: i32) -> (i32, i32) {
    %c0_i32 = arith.constant 0 : i32
    return %arg0, %arg1 : i32, i32
  }
}

</mosaic_0001>

<llo_original>
// kernel: tpu_custom_call.1
$region0: #{tpu_custom_call.1}
  #allocation0 [shape = 'u32[]', space=smem, size = 0x4, offset = 0x4, fixed_abs, tag = 'smem constant byte address 0x4 - core index']
  #allocation1 [shape = 'u32[144,128]{1,0:T(1,128)}', space=vmem, size = 0x12000, scoped, tag = 'internal scratch']
  %s0 = inlined_call_operand.hbm [shape: f32[32,32], index: 0, kind: input, shape index: {}]
  %s1 = inlined_call_operand.hbm [shape: f32[32,32], index: 1, kind: input, shape index: {}]
  %s2 = inlined_call_operand.hbm [shape: f32[32,32], index: 2, kind: output, shape index: {}]
  %s3 = sld [smem:[#allocation0]]
  $region26: #{tpu_custom_call.1} parent=0
    _
  %s5 = ssub.s32 1, %s3
  %s6 = scalar_select 0, %s5, %s3
  $region1: #{tpu_custom_call.1} parent=0
    #allocation2 [shape = 'u8[16384]{0}', space=vmem, size = 0x4000, scoped, tag = 'input window, operand 0, single buffered']
    #allocation3 [shape = 's32[1]{0}', space=sflag, size = 0x4, scoped, tag = 'scoped memory for tpu_custom_call.1']
    #allocation4 [shape = 's32[1]{0}', space=sflag, size = 0x4, scoped, tag = 'scoped memory for tpu_custom_call.1']
    #allocation5 [shape = 'u8[16384]{0}', space=vmem, size = 0x4000, scoped, tag = 'input window, operand 1, single buffered']
    #allocation6 [shape = 's32[1]{0}', space=sflag, size = 0x4, scoped, tag = 'scoped memory for tpu_custom_call.1']
    #allocation7 [shape = 'u8[16384]{0}', space=vmem, size = 0x4000, scoped, tag = 'output window, operand 0, single buffered']
    %7 = vsyncpa [#allocation3], 0
    %8 = vsyncpa [#allocation6], 0
    %9 = vsyncpa [#allocation4], 0
    // Predicated region
    $region2: #{tpu_custom_call.1} parent=1 // pred_check
      _
    $region3: #{tpu_custom_call.1} parent=1 // pred_check_branch
      %11 = sbr.rel (0) target = $region5
    $region4: #{tpu_custom_call.1} parent=1 // pred_region
      %s13 = ssub.s32 512, 512
      %14 = vsyncadd [#allocation3], %s13
      %s15 = sshll.u32 [#allocation2], 4
      %s16 = int_to_ptr.vmem [resolvable:$true] %s15
      %21 = dma.hbm_to_vmem [thread:$0]  %s0, 512, %s16, [#allocation3], 128, 128, 8
    $region5: #{tpu_custom_call.1} parent=1 // pred_fallthru
      _
    // Predicated region
    $region6: #{tpu_custom_call.1} parent=1 // pred_check
      _
    $region7: #{tpu_custom_call.1} parent=1 // pred_check_branch
      %23 = sbr.rel (0) target = $region9
    $region8: #{tpu_custom_call.1} parent=1 // pred_region
      %s25 = ssub.s32 512, 512
      %26 = vsyncadd [#allocation6], %s25
      %s27 = sshll.u32 [#allocation5], 4
      %s28 = int_to_ptr.vmem [resolvable:$true] %s27
      %33 = dma.hbm_to_vmem [thread:$0]  %s1, 512, %s28, [#allocation6], 128, 128, 8
    $region9: #{tpu_custom_call.1} parent=1 // pred_fallthru
      _
    // Predicated region
    $region10: #{tpu_custom_call.1} parent=1 // pred_check
      _
    $region11: #{tpu_custom_call.1} parent=1 // pred_check_branch
      %35 = sbr.rel (0) target = $region13
    $region12: #{tpu_custom_call.1} parent=1 // pred_region
      %36 = dma.done [#allocation3], 512
    $region13: #{tpu_custom_call.1} parent=1 // pred_fallthru
      _
    // Predicated region
    $region14: #{tpu_custom_call.1} parent=1 // pred_check
      _
    $region15: #{tpu_custom_call.1} parent=1 // pred_check_branch
      %38 = sbr.rel (0) target = $region17
    $region16: #{tpu_custom_call.1} parent=1 // pred_region
      %39 = dma.done [#allocation6], 512
    $region17: #{tpu_custom_call.1} parent=1 // pred_fallthru
      _
    %v40 = vld [vmem:[#allocation2] sm:$0xff]
    %v41 = vld [vmem:[#allocation2 + $0x8] sm:$0xff]
    %v42 = vld [vmem:[#allocation2 + $0x10] sm:$0xff]
    %v43 = vld [vmem:[#allocation2 + $0x18] sm:$0xff]
    %v44 = vld [vmem:[#allocation5] sm:$0xff]
    %v45 = vld [vmem:[#allocation5 + $0x8] sm:$0xff]
    %v46 = vld [vmem:[#allocation5 + $0x10] sm:$0xff]
    %v47 = vld [vmem:[#allocation5 + $0x18] sm:$0xff]
    %vm48 = vcmask 261120
    %v50 = vsel %vm48, %v40, 0
    %v53 = vsel %vm48, %v41, 0
    %v56 = vsel %vm48, %v42, 0
    %v59 = vsel %vm48, %v43, 0
    %61 = vmatprep.subr.mxu0 0.0
    %62 = vmatpush1.msra.mxu0 %v44
    %63 = vmatprep.subr.mxu0 0.0
    %64 = vmatpush1.msra.mxu0 %v45
    %65 = vmatprep.subr.mxu0 0.0
    %66 = vmatpush1.msra.mxu0 %v46
    %67 = vmatprep.subr.mxu0 0.0
    %68 = vmatpush1.msra.mxu0 %v47
    %69 = vmatprep.subr.mxu0 0.0
    %70 = vmatpush1.msra.mxu0 0.0
    %71 = vmatprep.subr.mxu0 0.0
    %72 = vmatpush1.msra.mxu0 0.0
    %73 = vmatprep.subr.mxu0 0.0
    %74 = vmatpush1.msra.mxu0 0.0
    %75 = vmatprep.subr.mxu0 0.0
    %76 = vmatpush1.msra.mxu0 0.0
    %77 = vmatprep.subr.mxu0 0.0
    %78 = vmatpush1.msra.mxu0 0.0
    %79 = vmatprep.subr.mxu0 0.0
    %80 = vmatpush1.msra.mxu0 0.0
    %81 = vmatprep.subr.mxu0 0.0
    %82 = vmatpush1.msra.mxu0 0.0
    %83 = vmatprep.subr.mxu0 0.0
    %84 = vmatpush1.msra.mxu0 0.0
    %85 = vmatprep.subr.mxu0 0.0
    %86 = vmatpush1.msra.mxu0 0.0
    %87 = vmatprep.subr.mxu0 0.0
    %88 = vmatpush1.msra.mxu0 0.0
    %89 = vmatprep.subr.mxu0 0.0
    %90 = vmatpush1.msra.mxu0 0.0
    %91 = vmatprep.subr.mxu0 0.0
    %92 = vmatpush1.msra.mxu0 0.0
    %93 = vmatprep.subr.mxu0 0.0
    %94 = vmatpush1.msra.mxu0 0.0
    %95 = vmatprep.subr.mxu0 0.0
    %96 = vmatpush1.msra.mxu0 0.0
    %97 = vmatprep.subr.mxu0 0.0
    %98 = vmatpush1.msra.mxu0 0.0
    %99 = vmatprep.subr.mxu0 0.0
    %100 = vmatpush1.msra.mxu0 0.0
    %101 = vmatprep.subr.mxu0 0.0
    %102 = vmatpush1.msra.mxu0 0.0
    %103 = vmatprep.subr.mxu0 0.0
    %104 = vmatpush1.msra.mxu0 0.0
    %105 = vmatprep.subr.mxu0 0.0
    %106 = vmatpush1.msra.mxu0 0.0
    %107 = vmatprep.subr.mxu0 0.0
    %108 = vmatpush1.msra.mxu0 0.0
    %109 = vmatprep.subr.mxu0 0.0
    %110 = vmatpush1.msra.mxu0 0.0
    %111 = vmatprep.subr.mxu0 0.0
    %112 = vmatpush1.msra.mxu0 0.0
    %113 = vmatprep.subr.mxu0 0.0
    %114 = vmatpush1.msra.mxu0 0.0
    %115 = vmatprep.subr.mxu0 0.0
    %116 = vmatpush1.msra.mxu0 0.0
    %117 = vmatprep.subr.mxu0 0.0
    %118 = vmatpush1.msra.mxu0 0.0
    %119 = vmatprep.subr.mxu0 0.0
    %120 = vmatpush1.msra.mxu0 0.0
    %121 = vmatprep.subr.mxu0 0.0
    %122 = vmatpush1.msra.mxu0 0.0
    %123 = vmatprep.subr.mxu0 0.0
    %124 = vmatpush1.msra.mxu0 0.0
    %125 = vmatprep.mubr.f32.mxu0 0.0
    %126 = vmatmul.mubr.f32.gmra.mrb[0].mxu0 %v50
    %v127 = vpop.f32.mrb[0].mxu0
    %v128 = vadd.f32 0.0, %v127
    %v129 = vpop.f32.mrb[0].mxu0
    %130 = vmatprep.mubr.f32.mxu0 0.0
    %131 = vmatmul.mubr.f32.gmra.mrb[0].mxu0 %v53
    %v132 = vpop.f32.mrb[0].mxu0
    %v133 = vadd.f32 0.0, %v132
    %v134 = vpop.f32.mrb[0].mxu0
    %135 = vmatprep.mubr.f32.mxu0 0.0
    %136 = vmatmul.mubr.f32.gmra.mrb[0].mxu0 %v56
    %v137 = vpop.f32.mrb[0].mxu0
    %v138 = vadd.f32 0.0, %v137
    %v139 = vpop.f32.mrb[0].mxu0
    %140 = vmatprep.mubr.f32.mxu0 0.0
    %141 = vmatmul.mubr.f32.gmra.mrb[0].mxu0 %v59
    %v142 = vpop.f32.mrb[0].mxu0
    %v143 = vadd.f32 0.0, %v142
    %v144 = vpop.f32.mrb[0].mxu0
    %145 = vdwg.mxu0
    %146 = vst.msk [vmem:[#allocation7] sm:$0xff] %vm48, %v128
    %147 = vst.msk [vmem:[#allocation7 + $0x8] sm:$0xff] %vm48, %v133
    %148 = vst.msk [vmem:[#allocation7 + $0x10] sm:$0xff] %vm48, %v138
    %149 = vst.msk [vmem:[#allocation7 + $0x18] sm:$0xff] %vm48, %v143
    // Predicated region
    $region18: #{tpu_custom_call.1} parent=1 // pred_check
      _
    $region19: #{tpu_custom_call.1} parent=1 // pred_check_branch
      %151 = sbr.rel (0) target = $region21
    $region20: #{tpu_custom_call.1} parent=1 // pred_region
      %s153 = ssub.s32 512, 512
      %154 = vsyncadd [#allocation4], %s153
      %s155 = sshll.u32 [#allocation7], 4
      %s156 = int_to_ptr.vmem [resolvable:$true] %s155
      %161 = dma.vmem_to_hbm [thread:$0]  %s156, 512, %s2, [#allocation4], 128, 128, 8
    $region21: #{tpu_custom_call.1} parent=1 // pred_fallthru
      _
    // Predicated region
    $region22: #{tpu_custom_call.1} parent=1 // pred_check
      _
    $region23: #{tpu_custom_call.1} parent=1 // pred_check_branch
      %163 = sbr.rel (0) target = $region25
    $region24: #{tpu_custom_call.1} parent=1 // pred_region
      %164 = dma.done [#allocation4], 512
    $region25: #{tpu_custom_call.1} parent=1 // pred_fallthru
      _
    %165 = vsyncpa [#allocation3], 1
    %166 = vsyncpa [#allocation6], 1
    %167 = vsyncpa [#allocation4], 1

</llo_original>
